<compile_context>
chip_gen: v7x
topology: tpu7x:2x2x1
jax: 0.10.0
libtpu: 0.0.40
codegen_flags: <defaults>
</compile_context>

<pallas_src>
import jax
import jax.numpy as jnp
from jax.experimental import pallas as pl
from jax.experimental.pallas import tpu as pltpu

NEG_SLOPE = 0.2      # PyG GATConv default negative_slope
MASK_VAL = -1e30     # finite large-negative; all max/denominator math stays f32


def _round_up(a, b):
    return (a + b - 1) // b * b


def _tpu_caps():
    """(per-core VMEM bytes, has_bf16_eup) with safe fallbacks."""
    kind = ""
    try:
        kind = jax.devices()[0].device_kind.lower()
    except Exception:
        pass
    cap = None
    try:
        cap = getattr(pltpu.get_tpu_info(), "vmem_capacity_bytes", None)
    except Exception:
        cap = None
    if cap is None:
        cap = (64 << 20) if ("v7" in kind or "7x" in kind or not kind) else (128 << 20)
    # v5e and older have no bf16 EUP/VPU; v6e / v7x do.
    bf16_eup = not any(t in kind for t in ("v2", "v3", "v4", "v5"))
    return int(cap), bf16_eup


def _attn_footprint(tm, tk, n_pad, dp, h_item, resident):
    """Rough VMEM bytes for the attention kernel at a given tiling."""
    h_bytes = n_pad * dp * h_item if resident else 2 * tk * dp * h_item
    adj_bytes = 2 * tm * tk                  # int8 adj tiles, double-buffered
    out_bytes = 2 * tm * dp * 4              # f32 output block, double-buffered
    tmp_bytes = 4 * tm * tk * 4              # live f32 score temporaries
    small = 2 * (tk + tm + dp + 2 * tm) * 4  # logits, bias, m/l scratch
    return h_bytes + adj_bytes + out_bytes + tmp_bytes + small + (2 << 20)


def _projection(x_pad, w_aug, *, tm, n_pad, din_p, dp, mm_dtype, h_dtype, vmem_limit):
    """h = x @ W (+2 folded att columns); emits h plus f32 a_src / a_dst columns."""

    def proj_kernel(x_ref, w_ref, h_ref, asrc_ref, adst_ref):
        full = jnp.dot(x_ref[...].astype(mm_dtype), w_ref[...].astype(mm_dtype),
                       preferred_element_type=jnp.float32)
        h_ref[...] = full.astype(h_ref.dtype)
        asrc_ref[...] = full[:, dp - 2:dp - 1]   # W @ att_src^T projection (f32)
        adst_ref[...] = full[:, dp - 1:dp]       # W @ att_dst^T projection (f32)

    return pl.pallas_call(
        proj_kernel,
        out_shape=(jax.ShapeDtypeStruct((n_pad, dp), h_dtype),
                   jax.ShapeDtypeStruct((n_pad, 1), jnp.float32),
                   jax.ShapeDtypeStruct((n_pad, 1), jnp.float32)),
        grid=(n_pad // tm,),
        in_specs=[pl.BlockSpec((tm, din_p), lambda i: (i, 0)),
                  pl.BlockSpec((din_p, dp), lambda i: (0, 0))],
        out_specs=(pl.BlockSpec((tm, dp), lambda i: (i, 0)),
                   pl.BlockSpec((tm, 1), lambda i: (i, 0)),
                   pl.BlockSpec((tm, 1), lambda i: (i, 0))),
        compiler_params=pltpu.CompilerParams(
            dimension_semantics=("parallel",),
            vmem_limit_bytes=vmem_limit),
    )(x_pad, w_aug)


def _attention(adj, h, a_src_row, a_dst_col, bias_pad, *, tm, tk, n_pad, dp,
               mm_dtype, exp_bf16, approx_recip, resident, h_spec, vmem_limit):
    """out = softmax(mask(leaky_relu(a_dst + a_src^T))) @ h + bias, online softmax."""

    def attn_kernel(adj_ref, h_ref, asrc_ref, adst_ref, bias_ref, o_ref, m_sc, l_sc):
        j = pl.program_id(1)

        @pl.when(j == 0)
        def _():
            m_sc[...] = jnp.full_like(m_sc, MASK_VAL)
            l_sc[...] = jnp.zeros_like(l_sc)
            o_ref[...] = jnp.zeros_like(o_ref)

        # e[i, s] = leaky_relu(a_dst[i] + a_src[s]), masked by adjacency.
        e = adst_ref[...] + asrc_ref[...]                  # (TM, TK) f32
        e = jnp.maximum(e, NEG_SLOPE * e)                  # leaky_relu (slope < 1)
        e = jnp.where(adj_ref[...] > 0, e, MASK_VAL)

        # Online softmax. Invariant (do not weaken): MASK_VAL is finite and the
        # max/denominator carry stays f32. A row-tile whose leading source tiles
        # are fully masked temporarily accumulates p = exp(0) = 1 garbage, but it
        # is multiplied by scale = exp(MASK_VAL - m_real) == 0.0 (exact f32
        # underflow) as soon as a real neighbour appears; every real row has at
        # least its self-loop, and fully-masked padded rows are sliced off.
        m_prev = m_sc[...]
        m_new = jnp.maximum(m_prev, jnp.max(e, axis=-1, keepdims=True))
        scale = jnp.exp(m_prev - m_new)                    # f32
        d = e - m_new
        p = jnp.exp(d.astype(jnp.bfloat16)) if exp_bf16 else jnp.exp(d)
        l_sc[...] = scale * l_sc[...] + jnp.sum(p, axis=-1, keepdims=True
                                                ).astype(jnp.float32)

        if resident:                                       # VMEM-resident h
            start = pl.multiple_of(j * tk, tk)
            h_tile = h_ref[pl.ds(start, tk), :]
        else:                                              # streamed h tile
            h_tile = h_ref[...]
        o_ref[...] = scale * o_ref[...] + jnp.dot(
            p.astype(mm_dtype), h_tile, preferred_element_type=jnp.float32)
        m_sc[...] = m_new

        @pl.when(j == pl.num_programs(1) - 1)
        def _():
            inv = pl.reciprocal(l_sc[...], approx=approx_recip)
            o_ref[...] = o_ref[...] * inv + bias_ref[...]

    return pl.pallas_call(
        attn_kernel,
        out_shape=jax.ShapeDtypeStruct((n_pad, dp), jnp.float32),
        grid=(n_pad // tm, n_pad // tk),
        in_specs=[
            pl.BlockSpec((tm, tk), lambda i, j: (i, j)),   # adj (int8 stream)
            h_spec,                                        # h (resident or streamed)
            pl.BlockSpec((1, tk), lambda i, j: (0, j)),    # a_src (lane-major)
            pl.BlockSpec((tm, 1), lambda i, j: (i, 0)),    # a_dst
            pl.BlockSpec((1, dp), lambda i, j: (0, 0)),    # bias
        ],
        out_specs=pl.BlockSpec((tm, dp), lambda i, j: (i, 0)),
        scratch_shapes=[pltpu.VMEM((tm, 1), jnp.float32),  # running max
                        pltpu.VMEM((tm, 1), jnp.float32)], # running denominator
        compiler_params=pltpu.CompilerParams(
            dimension_semantics=("parallel", "arbitrary"),
            vmem_limit_bytes=vmem_limit),
    )(adj, h, a_src_row, a_dst_col, bias_pad)


def gat_conv(x, edge_index, w, att_src, att_dst, bias, *, mm_dtype=jnp.float32):
    """Pallas GATConv forward.

    x: [N, Din] f32, edge_index: [2, E] int32, w: [Din, Dout] (transposed vs torch),
    att_src / att_dst / bias: [1, Dout].
    mm_dtype: MXU operand dtype (jnp.float32 or jnp.bfloat16); accumulation f32.
    """
    N, din = x.shape
    dout = w.shape[1]

    cap, bf16_eup = _tpu_caps()
    budget = max(cap - (16 << 20), 16 << 20)          # leave Mosaic headroom
    vmem_limit = int(min(max(32 << 20, cap - (16 << 20)), cap))

    din_p = _round_up(din, 128)
    dp = _round_up(dout + 2, 128)                     # last 2 lanes: folded att proj

    use_bf16 = (mm_dtype == jnp.bfloat16)
    h_dtype = jnp.bfloat16 if use_bf16 else jnp.float32
    h_item = jnp.dtype(h_dtype).itemsize
    exp_bf16 = use_bf16 and bf16_eup                  # bf16 EUP exp on v6e/v7x only
    approx_recip = use_bf16

    # ---- tile selection (TM: target rows, TK: streamed sources) ------------
    # Powers-of-two multiples of 128 so both divide n_pad = round_up(N, max).
    if N <= 256:
        cands = [(128, 128)]
    elif budget >= (96 << 20):                        # 128-MiB-VMEM chips (v5e/v6e)
        cands = [(512, 1024), (256, 512), (128, 128)]
    else:                                             # 64-MiB-VMEM chips (v7x)
        cands = [(256, 1024), (256, 512), (128, 128)]
    TM = TK = 128
    n_pad = _round_up(N, 128)
    for tm_c, tk_c in cands:
        np_c = _round_up(N, max(tm_c, tk_c))
        if _attn_footprint(tm_c, tk_c, np_c, dp, h_item, resident=False) <= budget:
            TM, TK, n_pad = tm_c, tk_c, np_c
            break

    h_total = n_pad * dp * h_item
    resident = (h_total <= int(0.45 * budget)
                and _attn_footprint(TM, TK, n_pad, dp, h_item, True) <= budget)

    # ---- wrapper-side glue (tiny O(N + Din*Dout) layout work) ---------------
    x_pad = jnp.zeros((n_pad, din_p), jnp.float32).at[:N, :din].set(x)

    w_src = (w @ att_src.reshape(dout, 1)).reshape(din)     # W @ att_src^T
    w_dst = (w @ att_dst.reshape(dout, 1)).reshape(din)     # W @ att_dst^T
    w_aug = jnp.zeros((din_p, dp), jnp.float32)
    w_aug = w_aug.at[:din, :dout].set(w)
    w_aug = w_aug.at[:din, dp - 2].set(w_src)
    w_aug = w_aug.at[:din, dp - 1].set(w_dst)
    bias_pad = jnp.zeros((1, dp), jnp.float32).at[:, :dout].set(bias)

    # Dense int8 neighbourhood mask adj[target, source] = 1, plus self-loops
    # (PyG add_self_loops=True); real rows always have >= 1 unmasked entry.
    # TODO(synk): parallel (duplicate) edges are deduplicated by the dense mask;
    # PyG counts each duplicate separately in the softmax (multigraphs diverge).
    src, dst = edge_index[0], edge_index[1]
    adj = jnp.zeros((n_pad, n_pad), jnp.int8).at[dst, src].set(1)
    diag = jnp.arange(N)
    adj = adj.at[diag, diag].set(1)

    # ---- kernel 1: fused projection -----------------------------------------
    h_aug, a_src_col, a_dst_col = _projection(
        x_pad, w_aug, tm=TM, n_pad=n_pad, din_p=din_p, dp=dp,
        mm_dtype=mm_dtype, h_dtype=h_dtype, vmem_limit=vmem_limit)
    a_src_row = a_src_col.reshape(1, n_pad)    # contiguous O(N) reshape

    # ---- kernel 2: online-softmax attention + aggregation -------------------
    # Spec candidates, most VMEM-efficient first; fall back gracefully if the
    # single-buffered resident spec is rejected by this JAX/Mosaic build.
    spec_cands = []
    if resident:
        try:
            spec_cands.append((True, pl.BlockSpec(
                (n_pad, dp), lambda i, j: (0, 0), pipeline_mode=pl.Buffered(1))))
        except Exception:
            pass
        spec_cands.append((True, pl.BlockSpec((n_pad, dp), lambda i, j: (0, 0))))
    spec_cands.append((False, pl.BlockSpec((TK, dp), lambda i, j: (j, 0))))

    out_pad, err = None, None
    for res_flag, h_spec in spec_cands:
        try:
            out_pad = jax.block_until_ready(_attention(
                adj, h_aug, a_src_row, a_dst_col, bias_pad,
                tm=TM, tk=TK, n_pad=n_pad, dp=dp, mm_dtype=mm_dtype,
                exp_bf16=exp_bf16, approx_recip=approx_recip,
                resident=res_flag, h_spec=h_spec, vmem_limit=vmem_limit))
            break
        except Exception as e:     # fall back to a less VMEM-hungry h spec
            err = e
    if out_pad is None:
        raise err

    return out_pad[:N, :dout]


def gat_reference(x, edge_index, w, att_src, att_dst, bias):
    """Pure-JAX reference of the same dense GAT forward (correctness check)."""
    N = x.shape[0]
    src, dst = edge_index[0], edge_index[1]
    adj = jnp.zeros((N, N), jnp.float32).at[dst, src].set(1.0)
    diag = jnp.arange(N)
    adj = adj.at[diag, diag].set(1.0)
    h = x @ w
    a_src = jnp.sum(h * att_src, axis=-1, keepdims=True)
    a_dst = jnp.sum(h * att_dst, axis=-1, keepdims=True)
    e = a_dst + a_src.T
    e = jnp.where(e > 0, e, NEG_SLOPE * e)
    e = jnp.where(adj > 0, e, -jnp.inf)
    alpha = jax.nn.softmax(e, axis=-1)
    return alpha @ h + bias


if __name__ == "__main__":
    # Small synthetic graph: LayerConfig(dim_in=8, dim_out=8), heads=1.
    N, DIN, DOUT, E = 16, 8, 8, 40

    key = jax.random.PRNGKey(0)
    kx, ke, kw, ks, kd, kb = jax.random.split(key, 6)

    x = jax.random.normal(kx, (N, DIN), dtype=jnp.float32)
    edge_index = jax.random.randint(ke, (2, E), 0, N, dtype=jnp.int32)

    # Shapes match PyG GATConv:
    #   lin.weight [heads*out, in] -> stored transposed as [in, out]
    #   att_src / att_dst [1, heads, out] -> [1, out];  bias [heads*out] -> [1, out]
    w = jax.random.normal(kw, (DIN, DOUT), dtype=jnp.float32) * (1.0 / jnp.sqrt(DIN))
    att_src = jax.random.normal(ks, (1, DOUT), dtype=jnp.float32) * (1.0 / jnp.sqrt(DOUT))
    att_dst = jax.random.normal(kd, (1, DOUT), dtype=jnp.float32) * (1.0 / jnp.sqrt(DOUT))
    bias = jax.random.normal(kb, (1, DOUT), dtype=jnp.float32) * 0.1

    ref = gat_reference(x, edge_index, w, att_src, att_dst, bias)

    # f32 MXU operands: tight check vs reference.
    out_f32 = jax.block_until_ready(
        gat_conv(x, edge_index, w, att_src, att_dst, bias, mm_dtype=jnp.float32))
    assert out_f32.shape == (N, DOUT)
    assert jnp.allclose(out_f32, ref, atol=1e-4, rtol=1e-4), "f32 path mismatch"

    # bf16 MXU operands (+ bf16 h / bf16 exp on v6e+): loose check.
    out_bf16 = jax.block_until_ready(
        gat_conv(x, edge_index, w, att_src, att_dst, bias, mm_dtype=jnp.bfloat16))
    assert out_bf16.shape == (N, DOUT)
    assert jnp.allclose(out_bf16, ref, atol=5e-2, rtol=5e-2), "bf16 path mismatch"

    print("KERNEL_OK")
</pallas_src>

<mosaic_0001>
module attributes {stable_mosaic.version = 11 : i64} {
  func.func @proj_kernel(%arg0: i32, %arg1: memref<128x128xf32, #tpu.memory_space<vmem>>, %arg2: memref<128x128xf32, #tpu.memory_space<vmem>>, %arg3: memref<128x128xf32, #tpu.memory_space<vmem>>, %arg4: memref<128x1xf32, #tpu.memory_space<vmem>>, %arg5: memref<128x1xf32, #tpu.memory_space<vmem>>) attributes {dimension_semantics = [#tpu.dimension_semantics<parallel>], iteration_bounds = array<i64: 1>, scalar_prefetch = 0 : i64, scratch_operands = 0 : i64, tpu.core_type = #tpu.core_type<tc>, window_params = [{transform_indices = @transform_0, window_bounds = array<i64: 128, 128>}, {pipeline_mode = #tpu.pipeline_mode<synchronous>, transform_indices = @transform_1, window_bounds = array<i64: 128, 128>}, {transform_indices = @transform_2, window_bounds = array<i64: 128, 128>}, {transform_indices = @transform_3, window_bounds = array<i64: 128, 1>}, {transform_indices = @transform_4, window_bounds = array<i64: 128, 1>}]} {
    %c0 = arith.constant 0 : index
    %c0_0 = arith.constant 0 : index
    %0 = vector.load %arg1[%c0, %c0_0] : memref<128x128xf32, #tpu.memory_space<vmem>>, vector<128x128xf32>
    %c0_1 = arith.constant 0 : index
    %c0_2 = arith.constant 0 : index
    %1 = vector.load %arg2[%c0_1, %c0_2] : memref<128x128xf32, #tpu.memory_space<vmem>>, vector<128x128xf32>
    %cst = arith.constant dense<0.000000e+00> : vector<128x128xf32>
    %2 = tpu.matmul %0, %1, %cst {dimension_numbers = #tpu.dot_dimension_numbers<[1], [0], [0], [1], [0, 0, 1, 1], [], []>} : vector<128x128xf32>, vector<128x128xf32>, vector<128x128xf32> -> vector<128x128xf32>
    %c0_3 = arith.constant 0 : index
    %c0_4 = arith.constant 0 : index
    %3 = vector.load %arg3[%c0_3, %c0_4] : memref<128x128xf32, #tpu.memory_space<vmem>>, vector<128x128xf32>
    tpu.vector_store %arg3[%c0_3, %c0_4], %2 {strides = array<i32>} : memref<128x128xf32, #tpu.memory_space<vmem>>, vector<128x128xf32>,
    %4 = vector.extract_strided_slice %2 {offsets = [0, 126], sizes = [128, 1], strides = [1, 1]} : vector<128x128xf32> to vector<128x1xf32>
    %c0_5 = arith.constant 0 : index
    %c0_6 = arith.constant 0 : index
    %5 = vector.load %arg4[%c0_5, %c0_6] : memref<128x1xf32, #tpu.memory_space<vmem>>, vector<128x1xf32>
    tpu.vector_store %arg4[%c0_5, %c0_6], %4 {strides = array<i32>} : memref<128x1xf32, #tpu.memory_space<vmem>>, vector<128x1xf32>,
    %6 = vector.extract_strided_slice %2 {offsets = [0, 127], sizes = [128, 1], strides = [1, 1]} : vector<128x128xf32> to vector<128x1xf32>
    %c0_7 = arith.constant 0 : index
    %c0_8 = arith.constant 0 : index
    %7 = vector.load %arg5[%c0_7, %c0_8] : memref<128x1xf32, #tpu.memory_space<vmem>>, vector<128x1xf32>
    tpu.vector_store %arg5[%c0_7, %c0_8], %6 {strides = array<i32>} : memref<128x1xf32, #tpu.memory_space<vmem>>, vector<128x1xf32>,
    return
  }
  func.func @transform_0(%arg0: i32) -> (i32, i32) {
    %c0_i32 = arith.constant 0 : i32
    %c0_i32_0 = arith.constant 0 : i32
    return %arg0, %c0_i32 : i32, i32
  }
  func.func @transform_1(%arg0: i32) -> (i32, i32) {
    %c0_i32 = arith.constant 0 : i32
    %c0_i32_0 = arith.constant 0 : i32
    %c0_i32_1 = arith.constant 0 : i32
    return %c0_i32, %c0_i32_0 : i32, i32
  }
  func.func @transform_2(%arg0: i32) -> (i32, i32) {
    %c0_i32 = arith.constant 0 : i32
    %c0_i32_0 = arith.constant 0 : i32
    return %arg0, %c0_i32 : i32, i32
  }
  func.func @transform_3(%arg0: i32) -> (i32, i32) {
    %c0_i32 = arith.constant 0 : i32
    %c0_i32_0 = arith.constant 0 : i32
    return %arg0, %c0_i32 : i32, i32
  }
  func.func @transform_4(%arg0: i32) -> (i32, i32) {
    %c0_i32 = arith.constant 0 : i32
    %c0_i32_0 = arith.constant 0 : i32
    return %arg0, %c0_i32 : i32, i32
  }
}

</mosaic_0001>

<llo_original>
// kernel: tpu_custom_call.1
$region0: #{tpu_custom_call.1}
  #allocation0 [shape = 'u32[]', space=smem, size = 0x4, offset = 0x4, fixed_abs, tag = 'smem constant byte address 0x4 - core index']
  #allocation1 [shape = 'u32[144,128]{1,0:T(1,128)}', space=vmem, size = 0x12000, scoped, tag = 'internal scratch']
  %s0 = inlined_call_operand.hbm [shape: f32[128,128], index: 0, kind: input, shape index: {}]
  %s1 = inlined_call_operand.hbm [shape: f32[128,128], index: 1, kind: input, shape index: {}]
  %s2 = inlined_call_operand.hbm [shape: f32[128,128], index: 2, kind: output, shape index: {0}]
  %s3 = inlined_call_operand.hbm [shape: f32[128,1], index: 3, kind: output, shape index: {1}]
  %s4 = inlined_call_operand.hbm [shape: f32[128,1], index: 4, kind: output, shape index: {2}]
  %5 = xla_tuple %s2, %s3, %s4
  %s6 = sld [smem:[#allocation0]]
  $region42: #{tpu_custom_call.1} parent=0
    _
  %s8 = ssub.s32 1, %s6
  %s9 = scalar_select 0, %s8, %s6
  $region1: #{tpu_custom_call.1} parent=0
    #allocation2 [shape = 'u8[65536]{0}', space=vmem, size = 0x10000, scoped, tag = 'input window, operand 0, single buffered']
    #allocation3 [shape = 's32[1]{0}', space=sflag, size = 0x4, scoped, tag = 'scoped memory for tpu_custom_call.1']
    #allocation4 [shape = 's32[1]{0}', space=sflag, size = 0x4, scoped, tag = 'scoped memory for tpu_custom_call.1']
    #allocation5 [shape = 'u8[65536]{0}', space=vmem, size = 0x10000, scoped, tag = 'input window, operand 1, single buffered']
    #allocation6 [shape = 's32[1]{0}', space=sflag, size = 0x4, scoped, tag = 'scoped memory for tpu_custom_call.1']
    #allocation7 [shape = 'u8[65536]{0}', space=vmem, size = 0x10000, scoped, tag = 'output window, operand 0, single buffered']
    #allocation8 [shape = 'u8[65536]{0}', space=vmem, size = 0x10000, scoped, tag = 'output window, operand 1, single buffered']
    #allocation9 [shape = 's32[1]{0}', space=sflag, size = 0x4, scoped, tag = 'scoped memory for tpu_custom_call.1']
    #allocation10 [shape = 'u8[65536]{0}', space=vmem, size = 0x10000, scoped, tag = 'output window, operand 2, single buffered']
    %10 = vsyncpa [#allocation3], 0
    %11 = vsyncpa [#allocation6], 0
    %12 = vsyncpa [#allocation4], 0
    %13 = vsyncpa [#allocation9], 0
    // Predicated region
    $region2: #{tpu_custom_call.1} parent=1 // pred_check
      _
    $region3: #{tpu_custom_call.1} parent=1 // pred_check_branch
      %15 = sbr.rel (0) target = $region5
    $region4: #{tpu_custom_call.1} parent=1 // pred_region
      %s17 = ssub.s32 2048, 2048
      %18 = vsyncadd [#allocation3], %s17
      %s19 = sshll.u32 [#allocation2], 4
      %s20 = int_to_ptr.vmem [resolvable:$true] %s19
      %25 = dma.hbm_to_vmem [thread:$0]  %s0, 2048, %s20, [#allocation3], 128, 128, 8
    $region5: #{tpu_custom_call.1} parent=1 // pred_fallthru
      _
    // Predicated region
    $region6: #{tpu_custom_call.1} parent=1 // pred_check
      _
    $region7: #{tpu_custom_call.1} parent=1 // pred_check_branch
      %27 = sbr.rel (0) target = $region9
    $region8: #{tpu_custom_call.1} parent=1 // pred_region
      %s29 = ssub.s32 2048, 2048
      %30 = vsyncadd [#allocation6], %s29
      %s31 = sshll.u32 [#allocation5], 4
      %s32 = int_to_ptr.vmem [resolvable:$true] %s31
      %37 = dma.hbm_to_vmem [thread:$0]  %s1, 2048, %s32, [#allocation6], 128, 128, 8
    $region9: #{tpu_custom_call.1} parent=1 // pred_fallthru
      _
    // Predicated region
    $region10: #{tpu_custom_call.1} parent=1 // pred_check
      _
    $region11: #{tpu_custom_call.1} parent=1 // pred_check_branch
      %39 = sbr.rel (0) target = $region13
    $region12: #{tpu_custom_call.1} parent=1 // pred_region
      %40 = dma.done [#allocation3], 2048
    $region13: #{tpu_custom_call.1} parent=1 // pred_fallthru
      _
    // Predicated region
    $region14: #{tpu_custom_call.1} parent=1 // pred_check
      _
    $region15: #{tpu_custom_call.1} parent=1 // pred_check_branch
      %42 = sbr.rel (0) target = $region17
    $region16: #{tpu_custom_call.1} parent=1 // pred_region
      %43 = dma.done [#allocation6], 2048
    $region17: #{tpu_custom_call.1} parent=1 // pred_fallthru
      _
    %v44 = vld [vmem:[#allocation2] sm:$0xff]
    %v45 = vld [vmem:[#allocation2 + $0x8] sm:$0xff]
    %v46 = vld [vmem:[#allocation2 + $0x10] sm:$0xff]
    %v47 = vld [vmem:[#allocation2 + $0x18] sm:$0xff]
    %v48 = vld [vmem:[#allocation2 + $0x20] sm:$0xff]
    %v49 = vld [vmem:[#allocation2 + $0x28] sm:$0xff]
    %v50 = vld [vmem:[#allocation2 + $0x30] sm:$0xff]
    %v51 = vld [vmem:[#allocation2 + $0x38] sm:$0xff]
    %v52 = vld [vmem:[#allocation2 + $0x40] sm:$0xff]
    %v53 = vld [vmem:[#allocation2 + $0x48] sm:$0xff]
    %v54 = vld [vmem:[#allocation2 + $0x50] sm:$0xff]
    %v55 = vld [vmem:[#allocation2 + $0x58] sm:$0xff]
    %v56 = vld [vmem:[#allocation2 + $0x60] sm:$0xff]
    %v57 = vld [vmem:[#allocation2 + $0x68] sm:$0xff]
    %v58 = vld [vmem:[#allocation2 + $0x70] sm:$0xff]
    %v59 = vld [vmem:[#allocation2 + $0x78] sm:$0xff]
    %v60 = vld [vmem:[#allocation5] sm:$0xff]
    %v61 = vld [vmem:[#allocation5 + $0x8] sm:$0xff]
    %v62 = vld [vmem:[#allocation5 + $0x10] sm:$0xff]
    %v63 = vld [vmem:[#allocation5 + $0x18] sm:$0xff]
    %v64 = vld [vmem:[#allocation5 + $0x20] sm:$0xff]
    %v65 = vld [vmem:[#allocation5 + $0x28] sm:$0xff]
    %v66 = vld [vmem:[#allocation5 + $0x30] sm:$0xff]
    %v67 = vld [vmem:[#allocation5 + $0x38] sm:$0xff]
    %v68 = vld [vmem:[#allocation5 + $0x40] sm:$0xff]
    %v69 = vld [vmem:[#allocation5 + $0x48] sm:$0xff]
    %v70 = vld [vmem:[#allocation5 + $0x50] sm:$0xff]
    %v71 = vld [vmem:[#allocation5 + $0x58] sm:$0xff]
    %v72 = vld [vmem:[#allocation5 + $0x60] sm:$0xff]
    %v73 = vld [vmem:[#allocation5 + $0x68] sm:$0xff]
    %v74 = vld [vmem:[#allocation5 + $0x70] sm:$0xff]
    %v75 = vld [vmem:[#allocation5 + $0x78] sm:$0xff]
    %76 = vmatprep.subr.mxu0 0.0
    %77 = vmatpush1.msra.mxu0 %v60
    %78 = vmatprep.subr.mxu0 0.0
    %79 = vmatpush1.msra.mxu0 %v61
    %80 = vmatprep.subr.mxu0 0.0
    %81 = vmatpush1.msra.mxu0 %v62
    %82 = vmatprep.subr.mxu0 0.0
    %83 = vmatpush1.msra.mxu0 %v63
    %84 = vmatprep.subr.mxu0 0.0
    %85 = vmatpush1.msra.mxu0 %v64
    %86 = vmatprep.subr.mxu0 0.0
    %87 = vmatpush1.msra.mxu0 %v65
    %88 = vmatprep.subr.mxu0 0.0
    %89 = vmatpush1.msra.mxu0 %v66
    %90 = vmatprep.subr.mxu0 0.0
    %91 = vmatpush1.msra.mxu0 %v67
    %92 = vmatprep.subr.mxu0 0.0
    %93 = vmatpush1.msra.mxu0 %v68
    %94 = vmatprep.subr.mxu0 0.0
    %95 = vmatpush1.msra.mxu0 %v69
    %96 = vmatprep.subr.mxu0 0.0
    %97 = vmatpush1.msra.mxu0 %v70
    %98 = vmatprep.subr.mxu0 0.0
    %99 = vmatpush1.msra.mxu0 %v71
    %100 = vmatprep.subr.mxu0 0.0
    %101 = vmatpush1.msra.mxu0 %v72
    %102 = vmatprep.subr.mxu0 0.0
    %103 = vmatpush1.msra.mxu0 %v73
    %104 = vmatprep.subr.mxu0 0.0
    %105 = vmatpush1.msra.mxu0 %v74
    %106 = vmatprep.subr.mxu0 0.0
    %107 = vmatpush1.msra.mxu0 %v75
    %108 = vmatprep.subr.mxu0 0.0
    %109 = vmatpush1.msra.mxu0 0.0
    %110 = vmatprep.subr.mxu0 0.0
    %111 = vmatpush1.msra.mxu0 0.0
    %112 = vmatprep.subr.mxu0 0.0
    %113 = vmatpush1.msra.mxu0 0.0
    %114 = vmatprep.subr.mxu0 0.0
    %115 = vmatpush1.msra.mxu0 0.0
    %116 = vmatprep.subr.mxu0 0.0
    %117 = vmatpush1.msra.mxu0 0.0
    %118 = vmatprep.subr.mxu0 0.0
    %119 = vmatpush1.msra.mxu0 0.0
    %120 = vmatprep.subr.mxu0 0.0
    %121 = vmatpush1.msra.mxu0 0.0
    %122 = vmatprep.subr.mxu0 0.0
    %123 = vmatpush1.msra.mxu0 0.0
    %124 = vmatprep.subr.mxu0 0.0
    %125 = vmatpush1.msra.mxu0 0.0
    %126 = vmatprep.subr.mxu0 0.0
    %127 = vmatpush1.msra.mxu0 0.0
    %128 = vmatprep.subr.mxu0 0.0
    %129 = vmatpush1.msra.mxu0 0.0
    %130 = vmatprep.subr.mxu0 0.0
    %131 = vmatpush1.msra.mxu0 0.0
    %132 = vmatprep.subr.mxu0 0.0
    %133 = vmatpush1.msra.mxu0 0.0
    %134 = vmatprep.subr.mxu0 0.0
    %135 = vmatpush1.msra.mxu0 0.0
    %136 = vmatprep.subr.mxu0 0.0
    %137 = vmatpush1.msra.mxu0 0.0
    %138 = vmatprep.subr.mxu0 0.0
    %139 = vmatpush1.msra.mxu0 0.0
    %140 = vmatprep.mubr.f32.mxu0 0.0
    %141 = vmatmul.mubr.f32.gmra.mrb[0].mxu0 %v44
    %v142 = vpop.f32.mrb[0].mxu0
    %v143 = vadd.f32 0.0, %v142
    %v144 = vpop.f32.mrb[0].mxu0
    %145 = vmatprep.mubr.f32.mxu0 0.0
    %146 = vmatmul.mubr.f32.gmra.mrb[0].mxu0 %v45
    %v147 = vpop.f32.mrb[0].mxu0
    %v148 = vadd.f32 0.0, %v147
    %v149 = vpop.f32.mrb[0].mxu0
    %150 = vmatprep.mubr.f32.mxu0 0.0
    %151 = vmatmul.mubr.f32.gmra.mrb[0].mxu0 %v46
    %v152 = vpop.f32.mrb[0].mxu0
    %v153 = vadd.f32 0.0, %v152
    %v154 = vpop.f32.mrb[0].mxu0
    %155 = vmatprep.mubr.f32.mxu0 0.0
    %156 = vmatmul.mubr.f32.gmra.mrb[0].mxu0 %v47
    %v157 = vpop.f32.mrb[0].mxu0
    %v158 = vadd.f32 0.0, %v157
    %v159 = vpop.f32.mrb[0].mxu0
    %160 = vmatprep.mubr.f32.mxu0 0.0
    %161 = vmatmul.mubr.f32.gmra.mrb[0].mxu0 %v48
    %v162 = vpop.f32.mrb[0].mxu0
    %v163 = vadd.f32 0.0, %v162
    %v164 = vpop.f32.mrb[0].mxu0
    %165 = vmatprep.mubr.f32.mxu0 0.0
    %166 = vmatmul.mubr.f32.gmra.mrb[0].mxu0 %v49
    %v167 = vpop.f32.mrb[0].mxu0
    %v168 = vadd.f32 0.0, %v167
    %v169 = vpop.f32.mrb[0].mxu0
    %170 = vmatprep.mubr.f32.mxu0 0.0
    %171 = vmatmul.mubr.f32.gmra.mrb[0].mxu0 %v50
    %v172 = vpop.f32.mrb[0].mxu0
    %v173 = vadd.f32 0.0, %v172
    %v174 = vpop.f32.mrb[0].mxu0
    %175 = vmatprep.mubr.f32.mxu0 0.0
    %176 = vmatmul.mubr.f32.gmra.mrb[0].mxu0 %v51
    %v177 = vpop.f32.mrb[0].mxu0
    %v178 = vadd.f32 0.0, %v177
    %v179 = vpop.f32.mrb[0].mxu0
    %180 = vmatprep.mubr.f32.mxu0 0.0
    %181 = vmatmul.mubr.f32.gmra.mrb[0].mxu0 %v52
    %v182 = vpop.f32.mrb[0].mxu0
    %v183 = vadd.f32 0.0, %v182
    %v184 = vpop.f32.mrb[0].mxu0
    %185 = vmatprep.mubr.f32.mxu0 0.0
    %186 = vmatmul.mubr.f32.gmra.mrb[0].mxu0 %v53
    %v187 = vpop.f32.mrb[0].mxu0
    %v188 = vadd.f32 0.0, %v187
    %v189 = vpop.f32.mrb[0].mxu0
    %190 = vmatprep.mubr.f32.mxu0 0.0
    %191 = vmatmul.mubr.f32.gmra.mrb[0].mxu0 %v54
    %v192 = vpop.f32.mrb[0].mxu0
    %v193 = vadd.f32 0.0, %v192
    %v194 = vpop.f32.mrb[0].mxu0
    %195 = vmatprep.mubr.f32.mxu0 0.0
    %196 = vmatmul.mubr.f32.gmra.mrb[0].mxu0 %v55
    %v197 = vpop.f32.mrb[0].mxu0
    %v198 = vadd.f32 0.0, %v197
    %v199 = vpop.f32.mrb[0].mxu0
    %200 = vmatprep.mubr.f32.mxu0 0.0
    %201 = vmatmul.mubr.f32.gmra.mrb[0].mxu0 %v56
    %v202 = vpop.f32.mrb[0].mxu0
    %v203 = vadd.f32 0.0, %v202
    %v204 = vpop.f32.mrb[0].mxu0
    %205 = vmatprep.mubr.f32.mxu0 0.0
    %206 = vmatmul.mubr.f32.gmra.mrb[0].mxu0 %v57
    %v207 = vpop.f32.mrb[0].mxu0
    %v208 = vadd.f32 0.0, %v207
    %v209 = vpop.f32.mrb[0].mxu0
    %210 = vmatprep.mubr.f32.mxu0 0.0
    %211 = vmatmul.mubr.f32.gmra.mrb[0].mxu0 %v58
    %v212 = vpop.f32.mrb[0].mxu0
    %v213 = vadd.f32 0.0, %v212
    %v214 = vpop.f32.mrb[0].mxu0
    %215 = vmatprep.mubr.f32.mxu0 0.0
    %216 = vmatmul.mubr.f32.gmra.mrb[0].mxu0 %v59
    %v217 = vpop.f32.mrb[0].mxu0
    %v218 = vadd.f32 0.0, %v217
    %v219 = vpop.f32.mrb[0].mxu0
    %220 = vdwg.mxu0
    %221 = vst [vmem:[#allocation7] sm:$0xff] %v143
    %222 = vst [vmem:[#allocation7 + $0x8] sm:$0xff] %v148
    %223 = vst [vmem:[#allocation7 + $0x10] sm:$0xff] %v153
    %224 = vst [vmem:[#allocation7 + $0x18] sm:$0xff] %v158
    %225 = vst [vmem:[#allocation7 + $0x20] sm:$0xff] %v163
    %226 = vst [vmem:[#allocation7 + $0x28] sm:$0xff] %v168
    %227 = vst [vmem:[#allocation7 + $0x30] sm:$0xff] %v173
    %228 = vst [vmem:[#allocation7 + $0x38] sm:$0xff] %v178
    %229 = vst [vmem:[#allocation7 + $0x40] sm:$0xff] %v183
    %230 = vst [vmem:[#allocation7 + $0x48] sm:$0xff] %v188
    %231 = vst [vmem:[#allocation7 + $0x50] sm:$0xff] %v193
    %232 = vst [vmem:[#allocation7 + $0x58] sm:$0xff] %v198
    %233 = vst [vmem:[#allocation7 + $0x60] sm:$0xff] %v203
    %234 = vst [vmem:[#allocation7 + $0x68] sm:$0xff] %v208
    %235 = vst [vmem:[#allocation7 + $0x70] sm:$0xff] %v213
    %236 = vst [vmem:[#allocation7 + $0x78] sm:$0xff] %v218
    %253 = vrot.lane.b32.xlu0 %v143, 2
    %v254 = vpop.permute.xlu0 %253
    %255 = vrot.lane.b32.xlu0 %v148, 2
    %v256 = vpop.permute.xlu0 %255
    %257 = vrot.lane.b32.xlu0 %v153, 2
    %v258 = vpop.permute.xlu0 %257
    %259 = vrot.lane.b32.xlu0 %v158, 2
    %v260 = vpop.permute.xlu0 %259
    %261 = vrot.lane.b32.xlu0 %v163, 2
    %v262 = vpop.permute.xlu0 %261
    %263 = vrot.lane.b32.xlu0 %v168, 2
    %v264 = vpop.permute.xlu0 %263
    %265 = vrot.lane.b32.xlu0 %v173, 2
    %v266 = vpop.permute.xlu0 %265
    %267 = vrot.lane.b32.xlu0 %v178, 2
    %v268 = vpop.permute.xlu0 %267
    %269 = vrot.lane.b32.xlu0 %v183, 2
    %v270 = vpop.permute.xlu0 %269
    %271 = vrot.lane.b32.xlu0 %v188, 2
    %v272 = vpop.permute.xlu0 %271
    %273 = vrot.lane.b32.xlu0 %v193, 2
    %v274 = vpop.permute.xlu0 %273
    %275 = vrot.lane.b32.xlu0 %v198, 2
    %v276 = vpop.permute.xlu0 %275
    %277 = vrot.lane.b32.xlu0 %v203, 2
    %v278 = vpop.permute.xlu0 %277
    %279 = vrot.lane.b32.xlu0 %v208, 2
    %v280 = vpop.permute.xlu0 %279
    %281 = vrot.lane.b32.xlu0 %v213, 2
    %v282 = vpop.permute.xlu0 %281
    %283 = vrot.lane.b32.xlu0 %v218, 2
    %v284 = vpop.permute.xlu0 %283
    %vm301 = vcmask 7168
    %302 = vst.msk [vmem:[#allocation8] sm:$0xff] %vm301, %v254
    %303 = vst.msk [vmem:[#allocation8 + $0x8] sm:$0xff] %vm301, %v256
    %304 = vst.msk [vmem:[#allocation8 + $0x10] sm:$0xff] %vm301, %v258
    %305 = vst.msk [vmem:[#allocation8 + $0x18] sm:$0xff] %vm301, %v260
    %306 = vst.msk [vmem:[#allocation8 + $0x20] sm:$0xff] %vm301, %v262
    %307 = vst.msk [vmem:[#allocation8 + $0x28] sm:$0xff] %vm301, %v264
    %308 = vst.msk [vmem:[#allocation8 + $0x30] sm:$0xff] %vm301, %v266
    %309 = vst.msk [vmem:[#allocation8 + $0x38] sm:$0xff] %vm301, %v268
    %310 = vst.msk [vmem:[#allocation8 + $0x40] sm:$0xff] %vm301, %v270
    %311 = vst.msk [vmem:[#allocation8 + $0x48] sm:$0xff] %vm301, %v272
    %312 = vst.msk [vmem:[#allocation8 + $0x50] sm:$0xff] %vm301, %v274
    %313 = vst.msk [vmem:[#allocation8 + $0x58] sm:$0xff] %vm301, %v276
    %314 = vst.msk [vmem:[#allocation8 + $0x60] sm:$0xff] %vm301, %v278
    %315 = vst.msk [vmem:[#allocation8 + $0x68] sm:$0xff] %vm301, %v280
    %316 = vst.msk [vmem:[#allocation8 + $0x70] sm:$0xff] %vm301, %v282
    %317 = vst.msk [vmem:[#allocation8 + $0x78] sm:$0xff] %vm301, %v284
    %318 = vrot.lane.b32.xlu0 %v143, 1
    %v319 = vpop.permute.xlu0 %318
    %320 = vrot.lane.b32.xlu0 %v148, 1
    %v321 = vpop.permute.xlu0 %320
    %322 = vrot.lane.b32.xlu0 %v153, 1
    %v323 = vpop.permute.xlu0 %322
    %324 = vrot.lane.b32.xlu0 %v158, 1
    %v325 = vpop.permute.xlu0 %324
    %326 = vrot.lane.b32.xlu0 %v163, 1
    %v327 = vpop.permute.xlu0 %326
    %328 = vrot.lane.b32.xlu0 %v168, 1
    %v329 = vpop.permute.xlu0 %328
    %330 = vrot.lane.b32.xlu0 %v173, 1
    %v331 = vpop.permute.xlu0 %330
    %332 = vrot.lane.b32.xlu0 %v178, 1
    %v333 = vpop.permute.xlu0 %332
    %334 = vrot.lane.b32.xlu0 %v183, 1
    %v335 = vpop.permute.xlu0 %334
    %336 = vrot.lane.b32.xlu0 %v188, 1
    %v337 = vpop.permute.xlu0 %336
    %338 = vrot.lane.b32.xlu0 %v193, 1
    %v339 = vpop.permute.xlu0 %338
    %340 = vrot.lane.b32.xlu0 %v198, 1
    %v341 = vpop.permute.xlu0 %340
    %342 = vrot.lane.b32.xlu0 %v203, 1
    %v343 = vpop.permute.xlu0 %342
    %344 = vrot.lane.b32.xlu0 %v208, 1
    %v345 = vpop.permute.xlu0 %344
    %346 = vrot.lane.b32.xlu0 %v213, 1
    %v347 = vpop.permute.xlu0 %346
    %348 = vrot.lane.b32.xlu0 %v218, 1
    %v349 = vpop.permute.xlu0 %348
    %366 = vst.msk [vmem:[#allocation10] sm:$0xff] %vm301, %v319
    %367 = vst.msk [vmem:[#allocation10 + $0x8] sm:$0xff] %vm301, %v321
    %368 = vst.msk [vmem:[#allocation10 + $0x10] sm:$0xff] %vm301, %v323
    %369 = vst.msk [vmem:[#allocation10 + $0x18] sm:$0xff] %vm301, %v325
    %370 = vst.msk [vmem:[#allocation10 + $0x20] sm:$0xff] %vm301, %v327
    %371 = vst.msk [vmem:[#allocation10 + $0x28] sm:$0xff] %vm301, %v329
    %372 = vst.msk [vmem:[#allocation10 + $0x30] sm:$0xff] %vm301, %v331
    %373 = vst.msk [vmem:[#allocation10 + $0x38] sm:$0xff] %vm301, %v333
    %374 = vst.msk [vmem:[#allocation10 + $0x40] sm:$0xff] %vm301, %v335
    %375 = vst.msk [vmem:[#allocation10 + $0x48] sm:$0xff] %vm301, %v337
    %376 = vst.msk [vmem:[#allocation10 + $0x50] sm:$0xff] %vm301, %v339
    %377 = vst.msk [vmem:[#allocation10 + $0x58] sm:$0xff] %vm301, %v341
    %378 = vst.msk [vmem:[#allocation10 + $0x60] sm:$0xff] %vm301, %v343
    %379 = vst.msk [vmem:[#allocation10 + $0x68] sm:$0xff] %vm301, %v345
    %380 = vst.msk [vmem:[#allocation10 + $0x70] sm:$0xff] %vm301, %v347
    %381 = vst.msk [vmem:[#allocation10 + $0x78] sm:$0xff] %vm301, %v349
    // Predicated region
    $region18: #{tpu_custom_call.1} parent=1 // pred_check
      _
    $region19: #{tpu_custom_call.1} parent=1 // pred_check_branch
      %383 = sbr.rel (0) target = $region21
    $region20: #{tpu_custom_call.1} parent=1 // pred_region
      %s385 = ssub.s32 2048, 2048
      %386 = vsyncadd [#allocation4], %s385
      %s387 = sshll.u32 [#allocation7], 4
      %s388 = int_to_ptr.vmem [resolvable:$true] %s387
      %393 = dma.vmem_to_hbm [thread:$0]  %s388, 2048, %s2, [#allocation4], 128, 128, 8
    $region21: #{tpu_custom_call.1} parent=1 // pred_fallthru
      _
    // Predicated region
    $region22: #{tpu_custom_call.1} parent=1 // pred_check
      _
    $region23: #{tpu_custom_call.1} parent=1 // pred_check_branch
      %395 = sbr.rel (0) target = $region25
    $region24: #{tpu_custom_call.1} parent=1 // pred_region
      %s397 = ssub.s32 2048, 2048
      %398 = vsyncadd [#allocation9], %s397
      %s399 = sshll.u32 [#allocation8], 4
      %s400 = int_to_ptr.vmem [resolvable:$true] %s399
      %405 = dma.vmem_to_hbm [thread:$0]  %s400, 2048, %s3, [#allocation9], 128, 128, 8
    $region25: #{tpu_custom_call.1} parent=1 // pred_fallthru
      _
    // Predicated region
    $region26: #{tpu_custom_call.1} parent=1 // pred_check
      _
    $region27: #{tpu_custom_call.1} parent=1 // pred_check_branch
      %407 = sbr.rel (0) target = $region29
    $region28: #{tpu_custom_call.1} parent=1 // pred_region
      %s409 = ssub.s32 2048, 2048
      %410 = vsyncadd [#allocation9], %s409
      %s411 = sshll.u32 [#allocation10], 4
      %s412 = int_to_ptr.vmem [resolvable:$true] %s411
      %417 = dma.vmem_to_hbm [thread:$0]  %s412, 2048, %s4, [#allocation9], 128, 128, 8
    $region29: #{tpu_custom_call.1} parent=1 // pred_fallthru
      _
    // Predicated region
    $region30: #{tpu_custom_call.1} parent=1 // pred_check
      _
    $region31: #{tpu_custom_call.1} parent=1 // pred_check_branch
      %419 = sbr.rel (0) target = $region33
    $region32: #{tpu_custom_call.1} parent=1 // pred_region
      %420 = dma.done [#allocation4], 2048
    $region33: #{tpu_custom_call.1} parent=1 // pred_fallthru
      _
    // Predicated region
    $region34: #{tpu_custom_call.1} parent=1 // pred_check
      _
    $region35: #{tpu_custom_call.1} parent=1 // pred_check_branch
      %422 = sbr.rel (0) target = $region37
    $region36: #{tpu_custom_call.1} parent=1 // pred_region
      %423 = dma.done [#allocation9], 2048
    $region37: #{tpu_custom_call.1} parent=1 // pred_fallthru
      _
    // Predicated region
    $region38: #{tpu_custom_call.1} parent=1 // pred_check
      _
    $region39: #{tpu_custom_call.1} parent=1 // pred_check_branch
      %425 = sbr.rel (0) target = $region41
    $region40: #{tpu_custom_call.1} parent=1 // pred_region
      %426 = dma.done [#allocation9], 2048
    $region41: #{tpu_custom_call.1} parent=1 // pred_fallthru
      _
    %427 = vsyncpa [#allocation3], 1
    %428 = vsyncpa [#allocation6], 1
    %429 = vsyncpa [#allocation4], 1
    %430 = vsyncpa [#allocation9], 1

</llo_original>
